<compile_context>
chip_gen: v7x
topology: tpu7x:2x2x1
jax: 0.10.0
libtpu: 0.0.40
codegen_flags: <defaults>
</compile_context>

<pallas_src>
import numpy as np
import jax
import jax.numpy as jnp
from jax.experimental import pallas as pl
from jax.experimental.pallas import tpu as pltpu


# ----------------------------- parameter setup ------------------------------

def dct_mat(size):
    m = np.zeros((size, size), dtype=np.float64)
    for i in range(size):
        for j in range(size):
            c = np.sqrt(1.0 / size) if i == 0 else np.sqrt(2.0 / size)
            m[i, j] = c * np.cos((j + 0.5) * np.pi * i / size)
    return m.astype(np.float32)


def generate_filter(start, end, size):
    f = np.zeros((size, size), dtype=np.float32)
    for i in range(size):
        for j in range(size):
            f[i, j] = 0.0 if (i + j > end or i + j <= start) else 1.0
    return f


def init_params(window_size, M, key):
    """Deterministic, in-script parameter init matching LFS_Head.__init__."""
    S = window_size
    D = jnp.asarray(dct_mat(S))                      # _DCT_patch      (S, S)
    DT = jnp.asarray(dct_mat(S).T.copy())            # _DCT_patch_T    (S, S)
    keys = jax.random.split(key, M)
    bases, learns, fts = [], [], []
    for i in range(M):
        start = S * 2.0 / M * i
        end = S * 2.0 / M * (i + 1)
        base = generate_filter(start, end, S)                        # (S, S)
        bases.append(base)
        # nn.Parameter(randn(S,S)).normal_(0, 0.1)
        learns.append(np.asarray(jax.random.normal(keys[i], (S, S))) * 0.1)
        fts.append(base.sum())                                       # ft_num
    base3 = jnp.asarray(np.stack(bases, axis=-1), dtype=jnp.float32)   # (S, S, M)
    learn3 = jnp.asarray(np.stack(learns, axis=-1), dtype=jnp.float32)  # (S, S, M)
    ftnum = jnp.asarray(np.array(fts, dtype=np.float32).reshape(1, M))  # (1, M)
    return D, DT, base3, learn3, ftnum


# --------------------------------- kernel -----------------------------------

def lfs_kernel(pt_ref, k2_ref, fw_ref, out_ref):
    # pt_ref : (Fp, TB)  flattened patches, patch batch on lanes (lane-dense)
    # k2_ref : (Fp, Fp)  kron(D, D)  -- fused per-patch 2-D DCT
    # fw_ref : (M , Fp)  band filters with sigmoid + 1/ft_num already folded in
    # out_ref: (M , TB)  lane-dense output slab (transposed; undone in glue)
    dct = jnp.dot(k2_ref[...], pt_ref[...],
                  preferred_element_type=jnp.float32)          # (Fp, TB), MXU
    logv = jnp.log10(jnp.abs(dct) + 1e-15)                     # EUP compute floor
    out_ref[...] = jnp.dot(fw_ref[...], logv,
                           preferred_element_type=jnp.float32)  # (M, TB), MXU


# -------------------------------- wrapper -----------------------------------

def _round_up(a, b):
    return ((a + b - 1) // b) * b


def lfs_head_forward(x, params, *, window_size, M, tile_b=2048):
    """x: (N, 3, H, W) float32 in [-1, 1] (NCHW, like the PyTorch module)."""
    D, DT, base3, learn3, ftnum = params
    S = window_size
    N, C, H, W = x.shape
    F = S * S

    # grayscale + rescale (elementwise glue)
    gray = 0.299 * x[:, 0] + 0.587 * x[:, 1] + 0.114 * x[:, 2]     # (N, H, W)
    xs = (gray + 1.0) * 122.5
    xp = jnp.pad(xs, ((0, 0), (4, 4), (4, 4)))                     # zero pad 4

    sa = (H - S + 8) // 2 + 1
    # TODO(synk): the PyTorch `assert size_after == 149` only holds for
    # img_size=299; it is omitted here so small demo shapes can be used.

    # nn.Unfold(kernel=(S,S), stride=2, padding=4), built directly in
    # feature-major (F, B) order so the kernel sees a lane-dense patch batch
    # (B index = n*sa*sa + i*sa + j, F index = u*S + v).
    # TODO(synk): this glue still duplicates every pixel ~(S/2)^2 times in HBM;
    # an in-kernel overlapping-window gather would remove that traffic.
    pt = jnp.stack(
        [jnp.stack([xp[:, u::2, v::2][:, :sa, :sa] for v in range(S)], axis=0)
         for u in range(S)],
        axis=0)                                                    # (S, S, N, sa, sa)
    B = N * sa * sa
    pt = pt.reshape(F, B).astype(jnp.float32)

    # Fused Kronecker DCT:  vec_row(D @ P @ D^T) = kron(D, D) @ vec_row(P)
    K2 = jnp.kron(D, D).astype(jnp.float32)                        # (F, F)

    # Hoist grid-invariant filter math out of the kernel and fold in 1/ft_num:
    #   filt = base + 2*sigmoid(learnable) - 1 ;  out = (logv . filt) / ft_num
    sig = jax.nn.sigmoid(learn3)
    filt = base3 + 2.0 * sig - 1.0                                 # (S, S, M)
    filtW = (filt.reshape(F, M) / ftnum.reshape(1, M)).T           # (M, F)

    # pad feature dim to a sublane multiple, patch-batch dim to a lane multiple
    Fp = _round_up(F, 8)
    tb = _round_up(min(tile_b, _round_up(B, 128)), 128)
    Bpad = _round_up(B, tb)

    pt = jnp.pad(pt, ((0, Fp - F), (0, Bpad - B)))
    K2 = jnp.pad(K2, ((0, Fp - F), (0, Fp - F)))
    filtW = jnp.pad(filtW, ((0, 0), (0, Fp - F)))   # zero cols kill padded rows

    out_t = pl.pallas_call(
        lfs_kernel,
        out_shape=jax.ShapeDtypeStruct((M, Bpad), jnp.float32),
        grid_spec=pltpu.PrefetchScalarGridSpec(
            num_scalar_prefetch=0,
            grid=(Bpad // tb,),
            in_specs=[
                pl.BlockSpec((Fp, tb), lambda i: (0, i)),   # patches (lane-dense)
                pl.BlockSpec((Fp, Fp), lambda i: (0, 0)),   # kron DCT (fetched once)
                pl.BlockSpec((M, Fp), lambda i: (0, 0)),    # folded band filters
            ],
            out_specs=pl.BlockSpec((M, tb), lambda i: (0, i)),
        ),
        compiler_params=pltpu.CompilerParams(
            # single grid axis is independent per patch tile -> shards across
            # v7x's 2 TensorCores when grid >= 2 (real 299x299 inputs)
            dimension_semantics=("parallel",)),
    )(pt, K2, filtW)

    out = out_t[:, :B].reshape(M, N, sa, sa)
    return jnp.transpose(out, (1, 0, 2, 3))                        # (N, M, sa, sa)


# --------------------------- pure-JAX reference ------------------------------

def lfs_head_reference(x, params, *, window_size, M):
    D, DT, base3, learn3, ftnum = params
    S = window_size
    N, C, H, W = x.shape
    gray = 0.299 * x[:, 0] + 0.587 * x[:, 1] + 0.114 * x[:, 2]
    xs = (gray + 1.0) * 122.5
    xp = jnp.pad(xs, ((0, 0), (4, 4), (4, 4)))
    sa = (H - S + 8) // 2 + 1
    patches = jnp.stack(
        [jnp.stack([xp[:, di::2, dj::2][:, :sa, :sa] for dj in range(S)],
                   axis=-1)
         for di in range(S)],
        axis=-2)                                                   # (N, sa, sa, S, S)
    dct = jnp.einsum('us,nijsv->nijuv', D, patches, precision='highest')
    dct = jnp.einsum('nijuv,vw->nijuw', dct, DT, precision='highest')
    logv = jnp.log10(jnp.abs(dct) + 1e-15)
    sig = 1.0 / (1.0 + jnp.exp(-learn3))
    filt = base3 + 2.0 * sig - 1.0                                 # (S, S, M)
    out = jnp.einsum('nijuv,uvm->nmij', logv, filt, precision='highest')
    return out / ftnum.reshape(1, M, 1, 1)


# ----------------------------------- main ------------------------------------

if __name__ == "__main__":
    key = jax.random.PRNGKey(0)
    k_x, k_p = jax.random.split(key)

    # small demo shapes (real F3Net: img_size=299, window_size=10, M=6)
    N, C, H, W = 2, 3, 20, 20
    S, M = 8, 4

    x = jax.random.uniform(k_x, (N, C, H, W), jnp.float32,
                           minval=-1.0, maxval=1.0)
    params = init_params(S, M, k_p)

    out = lfs_head_forward(x, params, window_size=S, M=M)
    out = jax.block_until_ready(out)

    ref = lfs_head_reference(x, params, window_size=S, M=M)
    ref = jax.block_until_ready(ref)

    assert out.shape == ref.shape, (out.shape, ref.shape)
    # loose tolerance: log10 near tiny DCT coefficients amplifies f32 matmul error
    if not np.allclose(np.asarray(out), np.asarray(ref), rtol=2e-2, atol=0.5):
        err = float(jnp.max(jnp.abs(out - ref)))
        raise RuntimeError(f"kernel/reference mismatch, max abs err {err}")

    print("KERNEL_OK")
</pallas_src>

<mosaic_0001>
module attributes {stable_mosaic.version = 11 : i64} {
  func.func @lfs_kernel(%arg0: i32, %arg1: memref<64x256xf32, #tpu.memory_space<vmem>>, %arg2: memref<64x64xf32, #tpu.memory_space<vmem>>, %arg3: memref<4x64xf32, #tpu.memory_space<vmem>>, %arg4: memref<4x256xf32, #tpu.memory_space<vmem>>) attributes {dimension_semantics = [#tpu.dimension_semantics<parallel>], iteration_bounds = array<i64: 1>, scalar_prefetch = 0 : i64, scratch_operands = 0 : i64, tpu.core_type = #tpu.core_type<tc>, window_params = [{transform_indices = @transform_0, window_bounds = array<i64: 64, 256>}, {pipeline_mode = #tpu.pipeline_mode<synchronous>, transform_indices = @transform_1, window_bounds = array<i64: 64, 64>}, {pipeline_mode = #tpu.pipeline_mode<synchronous>, transform_indices = @transform_2, window_bounds = array<i64: 4, 64>}, {transform_indices = @transform_3, window_bounds = array<i64: 4, 256>}]} {
    %c0 = arith.constant 0 : index
    %c0_0 = arith.constant 0 : index
    %0 = vector.load %arg2[%c0, %c0_0] : memref<64x64xf32, #tpu.memory_space<vmem>>, vector<64x64xf32>
    %c0_1 = arith.constant 0 : index
    %c0_2 = arith.constant 0 : index
    %1 = vector.load %arg1[%c0_1, %c0_2] : memref<64x256xf32, #tpu.memory_space<vmem>>, vector<64x256xf32>
    %cst = arith.constant dense<0.000000e+00> : vector<64x256xf32>
    %2 = tpu.matmul %0, %1, %cst {dimension_numbers = #tpu.dot_dimension_numbers<[1], [0], [0], [1], [0, 0, 1, 1], [], []>} : vector<64x64xf32>, vector<64x256xf32>, vector<64x256xf32> -> vector<64x256xf32>
    %3 = math.absf %2 : vector<64x256xf32>
    %cst_3 = arith.constant 1.000000e-15 : f32
    %4 = vector.broadcast %cst_3 : f32 to vector<64x256xf32>
    %5 = arith.addf %3, %4 : vector<64x256xf32>
    %6 = math.log %5 : vector<64x256xf32>
    %cst_4 = arith.constant 0.434294492 : f32
    %7 = vector.broadcast %cst_4 : f32 to vector<64x256xf32>
    %8 = arith.mulf %6, %7 : vector<64x256xf32>
    %c0_5 = arith.constant 0 : index
    %c0_6 = arith.constant 0 : index
    %9 = vector.load %arg3[%c0_5, %c0_6] : memref<4x64xf32, #tpu.memory_space<vmem>>, vector<4x64xf32>
    %cst_7 = arith.constant dense<0.000000e+00> : vector<4x256xf32>
    %10 = tpu.matmul %9, %8, %cst_7 {dimension_numbers = #tpu.dot_dimension_numbers<[1], [0], [0], [1], [0, 0, 1, 1], [], []>} : vector<4x64xf32>, vector<64x256xf32>, vector<4x256xf32> -> vector<4x256xf32>
    %c0_8 = arith.constant 0 : index
    %c0_9 = arith.constant 0 : index
    %11 = vector.load %arg4[%c0_8, %c0_9] : memref<4x256xf32, #tpu.memory_space<vmem>>, vector<4x256xf32>
    tpu.vector_store %arg4[%c0_8, %c0_9], %10 {strides = array<i32>} : memref<4x256xf32, #tpu.memory_space<vmem>>, vector<4x256xf32>,
    return
  }
  func.func @transform_0(%arg0: i32) -> (i32, i32) {
    %c0_i32 = arith.constant 0 : i32
    %c0_i32_0 = arith.constant 0 : i32
    return %c0_i32, %arg0 : i32, i32
  }
  func.func @transform_1(%arg0: i32) -> (i32, i32) {
    %c0_i32 = arith.constant 0 : i32
    %c0_i32_0 = arith.constant 0 : i32
    %c0_i32_1 = arith.constant 0 : i32
    return %c0_i32, %c0_i32_0 : i32, i32
  }
  func.func @transform_2(%arg0: i32) -> (i32, i32) {
    %c0_i32 = arith.constant 0 : i32
    %c0_i32_0 = arith.constant 0 : i32
    %c0_i32_1 = arith.constant 0 : i32
    return %c0_i32, %c0_i32_0 : i32, i32
  }
  func.func @transform_3(%arg0: i32) -> (i32, i32) {
    %c0_i32 = arith.constant 0 : i32
    %c0_i32_0 = arith.constant 0 : i32
    return %c0_i32, %arg0 : i32, i32
  }
}

</mosaic_0001>

<llo_original>
// kernel: tpu_custom_call.1
$region0: #{tpu_custom_call.1}
  #allocation0 [shape = 'u32[]', space=smem, size = 0x4, offset = 0x4, fixed_abs, tag = 'smem constant byte address 0x4 - core index']
  #allocation1 [shape = 'u32[144,128]{1,0:T(1,128)}', space=vmem, size = 0x12000, scoped, tag = 'internal scratch']
  %s0 = inlined_call_operand.hbm [shape: f32[64,256], index: 0, kind: input, shape index: {}]
  %s1 = inlined_call_operand.hbm [shape: f32[64,64], index: 1, kind: input, shape index: {}]
  %s2 = inlined_call_operand.vmem [shape: f32[4,64], index: 2, kind: input, shape index: {}]
  %s3 = inlined_call_operand.hbm [shape: f32[4,256], index: 3, kind: output, shape index: {}]
  %s4 = sld [smem:[#allocation0]]
  $region30: #{tpu_custom_call.1} parent=0
    _
  %s6 = ssub.s32 1, %s4
  %s7 = scalar_select 0, %s6, %s4
  $region1: #{tpu_custom_call.1} parent=0
    #allocation2 [shape = 'u8[65536]{0}', space=vmem, size = 0x10000, scoped, tag = 'input window, operand 0, single buffered']
    #allocation3 [shape = 's32[1]{0}', space=sflag, size = 0x4, scoped, tag = 'scoped memory for tpu_custom_call.1']
    #allocation4 [shape = 's32[1]{0}', space=sflag, size = 0x4, scoped, tag = 'scoped memory for tpu_custom_call.1']
    #allocation5 [shape = 'u8[32768]{0}', space=vmem, size = 0x8000, scoped, tag = 'input window, operand 1, single buffered']
    #allocation6 [shape = 's32[1]{0}', space=sflag, size = 0x4, scoped, tag = 'scoped memory for tpu_custom_call.1']
    #allocation7 [shape = 'u8[4096]{0}', space=vmem, size = 0x1000, scoped, tag = 'output window, operand 0, single buffered']
    %8 = vsyncpa [#allocation3], 0
    %9 = vsyncpa [#allocation6], 0
    %10 = vsyncpa [#allocation4], 0
    // Predicated region
    $region2: #{tpu_custom_call.1} parent=1 // pred_check
      _
    $region3: #{tpu_custom_call.1} parent=1 // pred_check_branch
      %12 = sbr.rel (0) target = $region5
    $region4: #{tpu_custom_call.1} parent=1 // pred_region
      %s14 = ssub.s32 2048, 2048
      %15 = vsyncadd [#allocation3], %s14
      %s16 = sshll.u32 [#allocation2], 4
      %s17 = int_to_ptr.vmem [resolvable:$true] %s16
      %22 = dma.hbm_to_vmem [thread:$0]  %s0, 2048, %s17, [#allocation3], 256, 256, 16
    $region5: #{tpu_custom_call.1} parent=1 // pred_fallthru
      _
    // Predicated region
    $region6: #{tpu_custom_call.1} parent=1 // pred_check
      _
    $region7: #{tpu_custom_call.1} parent=1 // pred_check_branch
      %24 = sbr.rel (0) target = $region9
    $region8: #{tpu_custom_call.1} parent=1 // pred_region
      %s26 = ssub.s32 1024, 1024
      %27 = vsyncadd [#allocation6], %s26
      %s28 = sshll.u32 [#allocation5], 4
      %s29 = int_to_ptr.vmem [resolvable:$true] %s28
      %34 = dma.hbm_to_vmem [thread:$0]  %s1, 1024, %s29, [#allocation6], 128, 128, 8
    $region9: #{tpu_custom_call.1} parent=1 // pred_fallthru
      _
    // Predicated region
    $region10: #{tpu_custom_call.1} parent=1 // pred_check
      _
    $region11: #{tpu_custom_call.1} parent=1 // pred_check_branch
      %36 = sbr.rel (0) target = $region13
    $region12: #{tpu_custom_call.1} parent=1 // pred_region
      _
    $region13: #{tpu_custom_call.1} parent=1 // pred_fallthru
      _
    // Predicated region
    $region14: #{tpu_custom_call.1} parent=1 // pred_check
      _
    $region15: #{tpu_custom_call.1} parent=1 // pred_check_branch
      %38 = sbr.rel (0) target = $region17
    $region16: #{tpu_custom_call.1} parent=1 // pred_region
      %39 = dma.done [#allocation3], 2048
    $region17: #{tpu_custom_call.1} parent=1 // pred_fallthru
      _
    // Predicated region
    $region18: #{tpu_custom_call.1} parent=1 // pred_check
      _
    $region19: #{tpu_custom_call.1} parent=1 // pred_check_branch
      %41 = sbr.rel (0) target = $region21
    $region20: #{tpu_custom_call.1} parent=1 // pred_region
      %42 = dma.done [#allocation6], 1024
    $region21: #{tpu_custom_call.1} parent=1 // pred_fallthru
      _
    %v43 = vld [vmem:[#allocation5] sm:$0xff]
    %v44 = vld [vmem:[#allocation5 + $0x8] sm:$0xff]
    %v45 = vld [vmem:[#allocation5 + $0x10] sm:$0xff]
    %v46 = vld [vmem:[#allocation5 + $0x18] sm:$0xff]
    %v47 = vld [vmem:[#allocation5 + $0x20] sm:$0xff]
    %v48 = vld [vmem:[#allocation5 + $0x28] sm:$0xff]
    %v49 = vld [vmem:[#allocation5 + $0x30] sm:$0xff]
    %v50 = vld [vmem:[#allocation5 + $0x38] sm:$0xff]
    %v51 = vld [vmem:[#allocation2] sm:$0xff]
    %v52 = vld [vmem:[#allocation2 + $0x8] sm:$0xff]
    %v53 = vld [vmem:[#allocation2 + $0x10] sm:$0xff]
    %v54 = vld [vmem:[#allocation2 + $0x18] sm:$0xff]
    %v55 = vld [vmem:[#allocation2 + $0x20] sm:$0xff]
    %v56 = vld [vmem:[#allocation2 + $0x28] sm:$0xff]
    %v57 = vld [vmem:[#allocation2 + $0x30] sm:$0xff]
    %v58 = vld [vmem:[#allocation2 + $0x38] sm:$0xff]
    %v59 = vld [vmem:[#allocation2 + $0x40] sm:$0xff]
    %v60 = vld [vmem:[#allocation2 + $0x48] sm:$0xff]
    %v61 = vld [vmem:[#allocation2 + $0x50] sm:$0xff]
    %v62 = vld [vmem:[#allocation2 + $0x58] sm:$0xff]
    %v63 = vld [vmem:[#allocation2 + $0x60] sm:$0xff]
    %v64 = vld [vmem:[#allocation2 + $0x68] sm:$0xff]
    %v65 = vld [vmem:[#allocation2 + $0x70] sm:$0xff]
    %v66 = vld [vmem:[#allocation2 + $0x78] sm:$0xff]
    %vm67 = vcmask 523264
    %v69 = vsel %vm67, %v43, 0
    %v72 = vsel %vm67, %v44, 0
    %v75 = vsel %vm67, %v45, 0
    %v78 = vsel %vm67, %v46, 0
    %v81 = vsel %vm67, %v47, 0
    %v84 = vsel %vm67, %v48, 0
    %v87 = vsel %vm67, %v49, 0
    %v90 = vsel %vm67, %v50, 0
    %92 = vmatprep.subr.mxu0 %v52
    %93 = vmatpush1.msra.mxu0 %v51
    %94 = vmatprep.subr.mxu0 %v54
    %95 = vmatpush1.msra.mxu0 %v53
    %96 = vmatprep.subr.mxu0 %v56
    %97 = vmatpush1.msra.mxu0 %v55
    %98 = vmatprep.subr.mxu0 %v58
    %99 = vmatpush1.msra.mxu0 %v57
    %100 = vmatprep.subr.mxu0 %v60
    %101 = vmatpush1.msra.mxu0 %v59
    %102 = vmatprep.subr.mxu0 %v62
    %103 = vmatpush1.msra.mxu0 %v61
    %104 = vmatprep.subr.mxu0 %v64
    %105 = vmatpush1.msra.mxu0 %v63
    %106 = vmatprep.subr.mxu0 %v66
    %107 = vmatpush1.msra.mxu0 %v65
    %108 = vmatprep.subr.mxu0 0.0
    %109 = vmatpush1.msra.mxu0 0.0
    %110 = vmatprep.subr.mxu0 0.0
    %111 = vmatpush1.msra.mxu0 0.0
    %112 = vmatprep.subr.mxu0 0.0
    %113 = vmatpush1.msra.mxu0 0.0
    %114 = vmatprep.subr.mxu0 0.0
    %115 = vmatpush1.msra.mxu0 0.0
    %116 = vmatprep.subr.mxu0 0.0
    %117 = vmatpush1.msra.mxu0 0.0
    %118 = vmatprep.subr.mxu0 0.0
    %119 = vmatpush1.msra.mxu0 0.0
    %120 = vmatprep.subr.mxu0 0.0
    %121 = vmatpush1.msra.mxu0 0.0
    %122 = vmatprep.subr.mxu0 0.0
    %123 = vmatpush1.msra.mxu0 0.0
    %124 = vmatprep.subr.mxu0 0.0
    %125 = vmatpush1.msra.mxu0 0.0
    %126 = vmatprep.subr.mxu0 0.0
    %127 = vmatpush1.msra.mxu0 0.0
    %128 = vmatprep.subr.mxu0 0.0
    %129 = vmatpush1.msra.mxu0 0.0
    %130 = vmatprep.subr.mxu0 0.0
    %131 = vmatpush1.msra.mxu0 0.0
    %132 = vmatprep.subr.mxu0 0.0
    %133 = vmatpush1.msra.mxu0 0.0
    %134 = vmatprep.subr.mxu0 0.0
    %135 = vmatpush1.msra.mxu0 0.0
    %136 = vmatprep.subr.mxu0 0.0
    %137 = vmatpush1.msra.mxu0 0.0
    %138 = vmatprep.subr.mxu0 0.0
    %139 = vmatpush1.msra.mxu0 0.0
    %140 = vmatprep.subr.mxu0 0.0
    %141 = vmatpush1.msra.mxu0 0.0
    %142 = vmatprep.subr.mxu0 0.0
    %143 = vmatpush1.msra.mxu0 0.0
    %144 = vmatprep.subr.mxu0 0.0
    %145 = vmatpush1.msra.mxu0 0.0
    %146 = vmatprep.subr.mxu0 0.0
    %147 = vmatpush1.msra.mxu0 0.0
    %148 = vmatprep.subr.mxu0 0.0
    %149 = vmatpush1.msra.mxu0 0.0
    %150 = vmatprep.subr.mxu0 0.0
    %151 = vmatpush1.msra.mxu0 0.0
    %152 = vmatprep.subr.mxu0 0.0
    %153 = vmatpush1.msra.mxu0 0.0
    %154 = vmatprep.subr.mxu0 0.0
    %155 = vmatpush1.msra.mxu0 0.0
    %156 = vmatprep.mubr.f32.mxu0 0.0
    %157 = vmatmul.mubr.f32.gmra.mrb[0].mxu0 %v69
    %v158 = vpop.f32.mrb[0].mxu0
    %v159 = vadd.f32 0.0, %v158
    %v160 = vpop.f32.mrb[0].mxu0
    %v161 = vadd.f32 0.0, %v160
    %162 = vmatprep.mubr.f32.mxu0 0.0
    %163 = vmatmul.mubr.f32.gmra.mrb[0].mxu0 %v72
    %v164 = vpop.f32.mrb[0].mxu0
    %v165 = vadd.f32 0.0, %v164
    %v166 = vpop.f32.mrb[0].mxu0
    %v167 = vadd.f32 0.0, %v166
    %168 = vmatprep.mubr.f32.mxu0 0.0
    %169 = vmatmul.mubr.f32.gmra.mrb[0].mxu0 %v75
    %v170 = vpop.f32.mrb[0].mxu0
    %v171 = vadd.f32 0.0, %v170
    %v172 = vpop.f32.mrb[0].mxu0
    %v173 = vadd.f32 0.0, %v172
    %174 = vmatprep.mubr.f32.mxu0 0.0
    %175 = vmatmul.mubr.f32.gmra.mrb[0].mxu0 %v78
    %v176 = vpop.f32.mrb[0].mxu0
    %v177 = vadd.f32 0.0, %v176
    %v178 = vpop.f32.mrb[0].mxu0
    %v179 = vadd.f32 0.0, %v178
    %180 = vmatprep.mubr.f32.mxu0 0.0
    %181 = vmatmul.mubr.f32.gmra.mrb[0].mxu0 %v81
    %v182 = vpop.f32.mrb[0].mxu0
    %v183 = vadd.f32 0.0, %v182
    %v184 = vpop.f32.mrb[0].mxu0
    %v185 = vadd.f32 0.0, %v184
    %186 = vmatprep.mubr.f32.mxu0 0.0
    %187 = vmatmul.mubr.f32.gmra.mrb[0].mxu0 %v84
    %v188 = vpop.f32.mrb[0].mxu0
    %v189 = vadd.f32 0.0, %v188
    %v190 = vpop.f32.mrb[0].mxu0
    %v191 = vadd.f32 0.0, %v190
    %192 = vmatprep.mubr.f32.mxu0 0.0
    %193 = vmatmul.mubr.f32.gmra.mrb[0].mxu0 %v87
    %v194 = vpop.f32.mrb[0].mxu0
    %v195 = vadd.f32 0.0, %v194
    %v196 = vpop.f32.mrb[0].mxu0
    %v197 = vadd.f32 0.0, %v196
    %198 = vmatprep.mubr.f32.mxu0 0.0
    %199 = vmatmul.mubr.f32.gmra.mrb[0].mxu0 %v90
    %v200 = vpop.f32.mrb[0].mxu0
    %v201 = vadd.f32 0.0, %v200
    %v202 = vpop.f32.mrb[0].mxu0
    %v203 = vadd.f32 0.0, %v202
    %204 = vdwg.mxu0
    %v205 = vand.u32 2147483647, %v159
    %v206 = vand.u32 2147483647, %v161
    %v207 = vand.u32 2147483647, %v165
    %v208 = vand.u32 2147483647, %v167
    %v209 = vand.u32 2147483647, %v171
    %v210 = vand.u32 2147483647, %v173
    %v211 = vand.u32 2147483647, %v177
    %v212 = vand.u32 2147483647, %v179
    %v213 = vand.u32 2147483647, %v183
    %v214 = vand.u32 2147483647, %v185
    %v215 = vand.u32 2147483647, %v189
    %v216 = vand.u32 2147483647, %v191
    %v217 = vand.u32 2147483647, %v195
    %v218 = vand.u32 2147483647, %v197
    %v219 = vand.u32 2147483647, %v201
    %v220 = vand.u32 2147483647, %v203
    %v221 = vadd.f32 %v205, 1e-15
    %v222 = vadd.f32 %v206, 1e-15
    %v223 = vadd.f32 %v207, 1e-15
    %v224 = vadd.f32 %v208, 1e-15
    %v225 = vadd.f32 %v209, 1e-15
    %v226 = vadd.f32 %v210, 1e-15
    %v227 = vadd.f32 %v211, 1e-15
    %v228 = vadd.f32 %v212, 1e-15
    %v229 = vadd.f32 %v213, 1e-15
    %v230 = vadd.f32 %v214, 1e-15
    %v231 = vadd.f32 %v215, 1e-15
    %v232 = vadd.f32 %v216, 1e-15
    %v233 = vadd.f32 %v217, 1e-15
    %v234 = vadd.f32 %v218, 1e-15
    %v235 = vadd.f32 %v219, 1e-15
    %v236 = vadd.f32 %v220, 1e-15
    %v237 = vlog2.pop %v221
    %v238 = vmul.f32 %v237, 0.6931472
    %v239 = vlog2.pop %v222
    %v240 = vmul.f32 %v239, 0.6931472
    %v241 = vlog2.pop %v223
    %v242 = vmul.f32 %v241, 0.6931472
    %v243 = vlog2.pop %v224
    %v244 = vmul.f32 %v243, 0.6931472
    %v245 = vlog2.pop %v225
    %v246 = vmul.f32 %v245, 0.6931472
    %v247 = vlog2.pop %v226
    %v248 = vmul.f32 %v247, 0.6931472
    %v249 = vlog2.pop %v227
    %v250 = vmul.f32 %v249, 0.6931472
    %v251 = vlog2.pop %v228
    %v252 = vmul.f32 %v251, 0.6931472
    %v253 = vlog2.pop %v229
    %v254 = vmul.f32 %v253, 0.6931472
    %v255 = vlog2.pop %v230
    %v256 = vmul.f32 %v255, 0.6931472
    %v257 = vlog2.pop %v231
    %v258 = vmul.f32 %v257, 0.6931472
    %v259 = vlog2.pop %v232
    %v260 = vmul.f32 %v259, 0.6931472
    %v261 = vlog2.pop %v233
    %v262 = vmul.f32 %v261, 0.6931472
    %v263 = vlog2.pop %v234
    %v264 = vmul.f32 %v263, 0.6931472
    %v265 = vlog2.pop %v235
    %v266 = vmul.f32 %v265, 0.6931472
    %v267 = vlog2.pop %v236
    %v268 = vmul.f32 %v267, 0.6931472
    %v269 = vmul.f32 %v238, 0.4342945
    %v270 = vmul.f32 %v240, 0.4342945
    %v271 = vmul.f32 %v242, 0.4342945
    %v272 = vmul.f32 %v244, 0.4342945
    %v273 = vmul.f32 %v246, 0.4342945
    %v274 = vmul.f32 %v248, 0.4342945
    %v275 = vmul.f32 %v250, 0.4342945
    %v276 = vmul.f32 %v252, 0.4342945
    %v277 = vmul.f32 %v254, 0.4342945
    %v278 = vmul.f32 %v256, 0.4342945
    %v279 = vmul.f32 %v258, 0.4342945
    %v280 = vmul.f32 %v260, 0.4342945
    %v281 = vmul.f32 %v262, 0.4342945
    %v282 = vmul.f32 %v264, 0.4342945
    %v283 = vmul.f32 %v266, 0.4342945
    %v284 = vmul.f32 %v268, 0.4342945
    %v285 = vld [vmem:[%s2] sm:$0xf]
    %v287 = vsel %vm67, %v285, 0
    %289 = vmatprep.subr.mxu0 %v270
    %290 = vmatpush1.msra.mxu0 %v269
    %291 = vmatprep.subr.mxu0 %v272
    %292 = vmatpush1.msra.mxu0 %v271
    %293 = vmatprep.subr.mxu0 %v274
    %294 = vmatpush1.msra.mxu0 %v273
    %295 = vmatprep.subr.mxu0 %v276
    %296 = vmatpush1.msra.mxu0 %v275
    %297 = vmatprep.subr.mxu0 %v278
    %298 = vmatpush1.msra.mxu0 %v277
    %299 = vmatprep.subr.mxu0 %v280
    %300 = vmatpush1.msra.mxu0 %v279
    %301 = vmatprep.subr.mxu0 %v282
    %302 = vmatpush1.msra.mxu0 %v281
    %303 = vmatprep.subr.mxu0 %v284
    %304 = vmatpush1.msra.mxu0 %v283
    %305 = vmatprep.subr.mxu0 0.0
    %306 = vmatpush1.msra.mxu0 0.0
    %307 = vmatprep.subr.mxu0 0.0
    %308 = vmatpush1.msra.mxu0 0.0
    %309 = vmatprep.subr.mxu0 0.0
    %310 = vmatpush1.msra.mxu0 0.0
    %311 = vmatprep.subr.mxu0 0.0
    %312 = vmatpush1.msra.mxu0 0.0
    %313 = vmatprep.subr.mxu0 0.0
    %314 = vmatpush1.msra.mxu0 0.0
    %315 = vmatprep.subr.mxu0 0.0
    %316 = vmatpush1.msra.mxu0 0.0
    %317 = vmatprep.subr.mxu0 0.0
    %318 = vmatpush1.msra.mxu0 0.0
    %319 = vmatprep.subr.mxu0 0.0
    %320 = vmatpush1.msra.mxu0 0.0
    %321 = vmatprep.subr.mxu0 0.0
    %322 = vmatpush1.msra.mxu0 0.0
    %323 = vmatprep.subr.mxu0 0.0
    %324 = vmatpush1.msra.mxu0 0.0
    %325 = vmatprep.subr.mxu0 0.0
    %326 = vmatpush1.msra.mxu0 0.0
    %327 = vmatprep.subr.mxu0 0.0
    %328 = vmatpush1.msra.mxu0 0.0
    %329 = vmatprep.subr.mxu0 0.0
    %330 = vmatpush1.msra.mxu0 0.0
    %331 = vmatprep.subr.mxu0 0.0
    %332 = vmatpush1.msra.mxu0 0.0
    %333 = vmatprep.subr.mxu0 0.0
    %334 = vmatpush1.msra.mxu0 0.0
    %335 = vmatprep.subr.mxu0 0.0
    %336 = vmatpush1.msra.mxu0 0.0
    %337 = vmatprep.subr.mxu0 0.0
    %338 = vmatpush1.msra.mxu0 0.0
    %339 = vmatprep.subr.mxu0 0.0
    %340 = vmatpush1.msra.mxu0 0.0
    %341 = vmatprep.subr.mxu0 0.0
    %342 = vmatpush1.msra.mxu0 0.0
    %343 = vmatprep.subr.mxu0 0.0
    %344 = vmatpush1.msra.mxu0 0.0
    %345 = vmatprep.subr.mxu0 0.0
    %346 = vmatpush1.msra.mxu0 0.0
    %347 = vmatprep.subr.mxu0 0.0
    %348 = vmatpush1.msra.mxu0 0.0
    %349 = vmatprep.subr.mxu0 0.0
    %350 = vmatpush1.msra.mxu0 0.0
    %351 = vmatprep.subr.mxu0 0.0
    %352 = vmatpush1.msra.mxu0 0.0
    %353 = vmatprep.mubr.f32.mxu0 0.0
    %354 = vmatmul.mubr.f32.gmra.mrb[0].mxu0 %v287
    %v355 = vpop.f32.mrb[0].mxu0
    %v356 = vadd.f32 0.0, %v355
    %v357 = vpop.f32.mrb[0].mxu0
    %v358 = vadd.f32 0.0, %v357
    %359 = vdwg.mxu0
    %v362 = vcombine.low %v356, %v358
    %364 = vst [vmem:[#allocation7] sm:$0xff] %v362
    // Predicated region
    $region22: #{tpu_custom_call.1} parent=1 // pred_check
      _
    $region23: #{tpu_custom_call.1} parent=1 // pred_check_branch
      %366 = sbr.rel (0) target = $region25
    $region24: #{tpu_custom_call.1} parent=1 // pred_region
      %s368 = ssub.s32 128, 128
      %369 = vsyncadd [#allocation4], %s368
      %s371 = sshll.u32 [#allocation7], 4
      %s372 = int_to_ptr.vmem [resolvable:$true] %s371
      %374 = dma.vmem_to_hbm [thread:$0]  %s372, 128, %s3, [#allocation4]
    $region25: #{tpu_custom_call.1} parent=1 // pred_fallthru
      _
    // Predicated region
    $region26: #{tpu_custom_call.1} parent=1 // pred_check
      _
    $region27: #{tpu_custom_call.1} parent=1 // pred_check_branch
      %376 = sbr.rel (0) target = $region29
    $region28: #{tpu_custom_call.1} parent=1 // pred_region
      %377 = dma.done [#allocation4], 128
    $region29: #{tpu_custom_call.1} parent=1 // pred_fallthru
      _
    %378 = vsyncpa [#allocation3], 1
    %379 = vsyncpa [#allocation6], 1
    %380 = vsyncpa [#allocation4], 1

</llo_original>
